<compile_context>
chip_gen: v7x
topology: tpu7x:2x2x1
jax: 0.10.0
libtpu: 0.0.40
codegen_flags: <defaults>
</compile_context>

<pallas_src>
import functools

import jax
import jax.numpy as jnp
from jax import lax
from jax.experimental import pallas as pl
from jax.experimental.pallas import tpu as pltpu


def _vmem_limit_bytes():
    """Generation-aware scoped-VMEM budget (128 MiB v5e/v6e, 64 MiB v7x)."""
    try:
        cap = getattr(pltpu.get_tpu_info(), "vmem_capacity_bytes", 0)
    except Exception:
        cap = 0
    if cap:
        return min((cap * 3) // 4, 100 * 1024 * 1024)
    return 32 * 1024 * 1024  # conservative fallback, safe on all generations


_VMEM_LIMIT = _vmem_limit_bytes()


def _sublane_align(dtype):
    """Minimum sublane tile multiple for a dtype (8 f32 / 16 bf16 / 32 int8)."""
    return {4: 8, 2: 16, 1: 32}.get(jnp.dtype(dtype).itemsize, 8)


def _pick_tile(dim, desired, align, min_blocks=1):
    """Largest tile <= desired that divides dim and is a multiple of align.

    min_blocks > 1 additionally caps the tile so the axis yields at least that
    many blocks (keeps both v7x TensorCores fed on 'parallel' grid axes).
    Falls back to the full dimension (always a legal BlockSpec block dim)."""
    if min_blocks > 1 and dim >= min_blocks * align:
        desired = min(desired, dim // min_blocks)
    if dim <= desired:
        return dim
    t = (desired // align) * align
    while t >= align:
        if dim % t == 0:
            return t
        t -= align
    # TODO(synk): awkward (prime-ish) dims fall back to the full axis; add a
    # padded path if such shapes ever show up in practice.
    return dim


# ---------------------------------------------------------------------------
# Tiled matmul kernel:  out = x @ W   (qkv_bias=False -> no bias path needed;
# the proj bias is applied inside the fused attention epilogue).
# ---------------------------------------------------------------------------
def _matmul_kernel(x_ref, w_ref, o_ref, acc_ref):
    @pl.when(pl.program_id(2) == 0)
    def _():
        acc_ref[...] = jnp.zeros_like(acc_ref)

    acc_ref[...] += jnp.dot(x_ref[...], w_ref[...],
                            preferred_element_type=jnp.float32)

    @pl.when(pl.program_id(2) == pl.num_programs(2) - 1)
    def _():
        o_ref[...] = acc_ref[...].astype(o_ref.dtype)


def linear(x2d, w, *, tm=512, tn=512, tk=1024):
    """x2d: (M, K), w: (K, N) -> (M, N) in x2d.dtype (f32 accumulation)."""
    M, K = x2d.shape
    K2, N = w.shape
    assert K == K2
    salign = _sublane_align(x2d.dtype)
    # >=2 blocks along M when possible so both v7x TensorCores get work.
    tm = _pick_tile(M, tm, salign, min_blocks=2)
    tn = _pick_tile(N, tn, 128)
    tk = _pick_tile(K, tk, 128)
    grid = (M // tm, N // tn, K // tk)

    return pl.pallas_call(
        _matmul_kernel,
        out_shape=jax.ShapeDtypeStruct((M, N), x2d.dtype),
        grid=grid,
        in_specs=[pl.BlockSpec((tm, tk), lambda i, j, k: (i, k)),
                  pl.BlockSpec((tk, tn), lambda i, j, k: (k, j))],
        out_specs=pl.BlockSpec((tm, tn), lambda i, j, k: (i, j)),
        scratch_shapes=[pltpu.VMEM((tm, tn), jnp.float32)],
        compiler_params=pltpu.CompilerParams(
            dimension_semantics=("parallel", "parallel", "arbitrary"),
            vmem_limit_bytes=_VMEM_LIMIT),
    )(x2d, w)


# ---------------------------------------------------------------------------
# Attention + fused output projection, token-major layout, heads packed along D.
#   q:   (N, T, D)    head h lives in columns [h*hd, (h+1)*hd)
#   kv:  (N, T, 2D)   k in columns [:D], v in columns [D:], head-major
#   out: (N, T, D)    == proj(softmax(q k^T) v)  (already transpose(1,2).reshape)
#
# NOTE (perf): with head_dim = 8..16 (toy shapes) each per-head QK^T / PV dot
# contracts only hd lanes, so the MXU is <=12.5% utilized and the kernel is
# VPU / overhead bound; real DiT configs (hd = 64..128) feed the MXU properly.
# NOTE (perf): for D < 128 the output store is a masked partial-lane vst; fine
# for toy shapes, real DiT dims (>=384) are lane-dense.
# ---------------------------------------------------------------------------
def _attn_proj_kernel(q_ref, kv_ref, pw_ref, pb_ref, o_ref, *,
                      num_heads, head_dim, dim):
    """Full-KV (single KV block in VMEM) path: plain softmax, proj fused."""
    acc = None
    for h in range(num_heads):
        lo = h * head_dim
        qh = q_ref[:, pl.ds(lo, head_dim)]               # (tq, hd)
        kh = kv_ref[:, pl.ds(lo, head_dim)]              # (T,  hd)
        vh = kv_ref[:, pl.ds(dim + lo, head_dim)]        # (T,  hd)

        s = lax.dot_general(qh, kh, (((1,), (1,)), ((), ())),
                            preferred_element_type=jnp.float32)   # (tq, T)
        m = jnp.max(s, axis=-1, keepdims=True)
        p = jnp.exp(s - m)
        l = jnp.sum(p, axis=-1, keepdims=True)
        pv = jnp.dot(p.astype(vh.dtype), vh,
                     preferred_element_type=jnp.float32)          # (tq, hd)
        pv = pv * pl.reciprocal(l, approx=True)                   # EUP slot

        # Fused output projection: out += softmax_h @ proj_w[h*hd:(h+1)*hd, :].
        # Keeps every intermediate lane-dense (tq, D); no concat / scatter.
        contrib = jnp.dot(pv.astype(pw_ref.dtype),
                          pw_ref[pl.ds(lo, head_dim), :],
                          preferred_element_type=jnp.float32)     # (tq, D)
        acc = contrib if acc is None else acc + contrib

    o_ref[...] = (acc + pb_ref[...].astype(jnp.float32)).astype(o_ref.dtype)


def _flash_attn_proj_kernel(q_ref, kv_ref, pw_ref, pb_ref, o_ref,
                            m_ref, l_ref, acc_ref, *,
                            num_heads, head_dim, dim):
    """Fallback for KV too large for VMEM: online softmax over KV tiles,
    output projection fused into the finalize (single lane-dense epilogue)."""
    kv_step = pl.program_id(2)

    @pl.when(kv_step == 0)
    def _():
        m_ref[...] = jnp.full_like(m_ref, -jnp.inf)
        l_ref[...] = jnp.zeros_like(l_ref)
        acc_ref[...] = jnp.zeros_like(acc_ref)

    # TODO(synk): per-head (tq, hd) RMWs below are partial-lane stores; only
    # matters when this fallback path is actually taken (long KV).
    for h in range(num_heads):
        lo = h * head_dim
        hsl = pl.ds(lo, head_dim)
        qh = q_ref[:, hsl]                                # (tq, hd)
        kh = kv_ref[:, hsl]                               # (tk, hd)
        vh = kv_ref[:, pl.ds(dim + lo, head_dim)]         # (tk, hd)

        s = lax.dot_general(qh, kh, (((1,), (1,)), ((), ())),
                            preferred_element_type=jnp.float32)   # (tq, tk)
        m_prev = m_ref[:, hsl][:, 0:1]                    # (tq, 1)
        l_prev = l_ref[:, hsl][:, 0:1]                    # (tq, 1)
        m_new = jnp.maximum(m_prev, jnp.max(s, axis=-1, keepdims=True))
        alpha = jnp.exp(m_prev - m_new)
        p = jnp.exp(s - m_new)
        l_new = alpha * l_prev + jnp.sum(p, axis=-1, keepdims=True)

        acc_ref[:, hsl] = alpha * acc_ref[:, hsl] + jnp.dot(
            p.astype(vh.dtype), vh, preferred_element_type=jnp.float32)
        m_ref[:, hsl] = jnp.broadcast_to(m_new, (m_new.shape[0], head_dim))
        l_ref[:, hsl] = jnp.broadcast_to(l_new, (l_new.shape[0], head_dim))

    @pl.when(kv_step == pl.num_programs(2) - 1)
    def _():
        attn = acc_ref[...] * pl.reciprocal(l_ref[...], approx=True)  # (tq, D)
        out = jnp.dot(attn.astype(pw_ref.dtype), pw_ref[...],
                      preferred_element_type=jnp.float32)
        o_ref[...] = (out + pb_ref[...].astype(jnp.float32)).astype(o_ref.dtype)


def fused_cross_attention(q, kv, proj_w, proj_b, num_heads, *,
                          tq=256, tk=256, out_dtype=None,
                          max_kv_vmem_bytes=4 * 1024 * 1024,
                          force_flash=False):
    N, T, D = q.shape
    head_dim = D // num_heads
    out_dtype = out_dtype or q.dtype
    salign = _sublane_align(q.dtype)
    tq = _pick_tile(T, tq, salign)
    pb2d = proj_b.reshape(1, D)

    kv_block_bytes = T * 2 * D * jnp.dtype(kv.dtype).itemsize
    use_single_kv = (not force_flash) and kv_block_bytes <= max_kv_vmem_bytes

    cparams = lambda sem: pltpu.CompilerParams(
        dimension_semantics=sem, vmem_limit_bytes=_VMEM_LIMIT)

    if use_single_kv:
        kernel = functools.partial(_attn_proj_kernel, num_heads=num_heads,
                                   head_dim=head_dim, dim=D)
        return pl.pallas_call(
            kernel,
            out_shape=jax.ShapeDtypeStruct((N, T, D), out_dtype),
            grid=(N, T // tq),
            in_specs=[
                pl.BlockSpec((None, tq, D), lambda n, qi: (n, qi, 0)),
                pl.BlockSpec((None, T, 2 * D), lambda n, qi: (n, 0, 0)),
                pl.BlockSpec((D, D), lambda n, qi: (0, 0)),     # proj_w resident
                pl.BlockSpec((1, D), lambda n, qi: (0, 0)),     # proj_b resident
            ],
            out_specs=pl.BlockSpec((None, tq, D), lambda n, qi: (n, qi, 0)),
            compiler_params=cparams(("parallel", "parallel")),
        )(q, kv, proj_w, pb2d)

    # Fallback: online softmax over KV tiles (long KV), proj still fused.
    tk = _pick_tile(T, tk, salign)
    kernel = functools.partial(_flash_attn_proj_kernel, num_heads=num_heads,
                               head_dim=head_dim, dim=D)
    return pl.pallas_call(
        kernel,
        out_shape=jax.ShapeDtypeStruct((N, T, D), out_dtype),
        grid=(N, T // tq, T // tk),
        in_specs=[
            pl.BlockSpec((None, tq, D), lambda n, qi, ki: (n, qi, 0)),
            pl.BlockSpec((None, tk, 2 * D), lambda n, qi, ki: (n, ki, 0)),
            pl.BlockSpec((D, D), lambda n, qi, ki: (0, 0)),
            pl.BlockSpec((1, D), lambda n, qi, ki: (0, 0)),
        ],
        out_specs=pl.BlockSpec((None, tq, D), lambda n, qi, ki: (n, qi, 0)),
        scratch_shapes=[pltpu.VMEM((tq, D), jnp.float32),   # running max (bcast)
                        pltpu.VMEM((tq, D), jnp.float32),   # running sum (bcast)
                        pltpu.VMEM((tq, D), jnp.float32)],  # output accumulator
        compiler_params=cparams(("parallel", "parallel", "arbitrary")),
    )(q, kv, proj_w, pb2d)


# ---------------------------------------------------------------------------
# CrossAttention forward
# ---------------------------------------------------------------------------
def prepare_params(params, num_heads):
    """Fold 1/sqrt(head_dim) into the q weight once (not per forward call)."""
    D = params["q_w"].shape[0]
    scale = (D // num_heads) ** -0.5
    p = dict(params)
    p["q_w_scaled"] = params["q_w"] * scale
    return p


def cross_attention_forward(params, x, y, num_heads, *, mxu_dtype=None,
                            **attn_kwargs):
    """x: key/value source, y: query source; both (N, T, D)."""
    N, T, D = x.shape
    out_dtype = x.dtype
    q_w = params.get("q_w_scaled")
    if q_w is None:
        q_w = params["q_w"] * (D // num_heads) ** -0.5
    kv_w, proj_w, proj_b = params["kv_w"], params["proj_w"], params["proj_b"]

    x2d = x.reshape(N * T, D)
    y2d = y.reshape(N * T, D)
    if mxu_dtype is not None:
        # bf16 MXU feeds (v6e/v7x throughput + half the HBM traffic); all
        # accumulation and softmax statistics stay f32 inside the kernels.
        x2d = x2d.astype(mxu_dtype)
        y2d = y2d.astype(mxu_dtype)
        kv_w = kv_w.astype(mxu_dtype)
        q_w = q_w.astype(mxu_dtype)
        proj_w = proj_w.astype(mxu_dtype)

    # kv = Linear(D, 2D, bias=False)(x); q = Linear(D, D, bias=False)(y);
    # the softmax scale is already folded into q_w.
    kv = linear(x2d, kv_w)       # (N*T, 2D): [k | v], head-major along D
    q = linear(y2d, q_w)         # (N*T, D):  head-major along D

    # Token-major all the way (no HBM transposes); attention + proj fused.
    return fused_cross_attention(
        q.reshape(N, T, D), kv.reshape(N, T, 2 * D),
        proj_w, proj_b, num_heads, out_dtype=out_dtype, **attn_kwargs)


# Pure-JAX reference (mirrors the PyTorch module math exactly).
def cross_attention_ref(params, x, y, num_heads):
    N, T, D = x.shape
    H = num_heads
    hd = D // H
    scale = hd ** -0.5
    kv = x @ params["kv_w"]
    q = y @ params["q_w"]
    kv = kv.reshape(N, T, 2, H, hd).transpose(2, 0, 3, 1, 4)
    k, v = kv[0], kv[1]
    q = q.reshape(N, T, H, hd).transpose(0, 2, 1, 3) * scale
    attn = jax.nn.softmax(jnp.einsum("nhtd,nhsd->nhts", q, k), axis=-1)
    o = jnp.einsum("nhts,nhsd->nhtd", attn, v)
    o = o.transpose(0, 2, 1, 3).reshape(N, T, D)
    return o @ params["proj_w"] + params["proj_b"]


def _make_params(key, D):
    k_kv, k_q, k_pw, k_pb = jax.random.split(key, 4)
    return {
        "kv_w": jax.random.normal(k_kv, (D, 2 * D), jnp.float32) * 0.05,
        "q_w": jax.random.normal(k_q, (D, D), jnp.float32) * 0.05,
        "proj_w": jax.random.normal(k_pw, (D, D), jnp.float32) * 0.05,
        "proj_b": jax.random.normal(k_pb, (D,), jnp.float32) * 0.05,
    }


if __name__ == "__main__":
    key = jax.random.PRNGKey(0)

    # (batch, tokens, dim, heads): module-default small shape plus a larger one
    # exercising real tiling (multi-tile M in the linears, multi-tile q axis).
    for (N, T, D, H) in [(2, 8, 64, 8), (2, 256, 128, 8)]:
        key, k_x, k_y, k_p = jax.random.split(key, 4)
        x = jax.random.normal(k_x, (N, T, D), dtype=jnp.float32)
        y = jax.random.normal(k_y, (N, T, D), dtype=jnp.float32)
        params = _make_params(k_p, D)
        prep = prepare_params(params, H)
        ref = cross_attention_ref(params, x, y, H)

        # Primary path: full-KV-in-VMEM attention with fused output projection.
        out = jax.block_until_ready(cross_attention_forward(prep, x, y, H))
        assert out.shape == (N, T, D)
        err = float(jnp.max(jnp.abs(out - ref)))
        assert jnp.allclose(out, ref, atol=2e-3, rtol=2e-3), ("fused", N, T, err)

        # Fallback path (online softmax over KV tiles) — exercised explicitly.
        out_f = jax.block_until_ready(cross_attention_forward(
            prep, x, y, H, force_flash=True, tk=max(T // 4, 8)))
        err = float(jnp.max(jnp.abs(out_f - ref)))
        assert jnp.allclose(out_f, ref, atol=2e-3, rtol=2e-3), ("flash", N, T, err)

        # bf16 MXU-feed configuration (the v6e/v7x throughput setting); looser
        # tolerance appropriate for bf16 inputs, f32 accumulation throughout.
        if D >= 128 and T >= 16:
            out_bf = jax.block_until_ready(cross_attention_forward(
                prep, x, y, H, mxu_dtype=jnp.bfloat16))
            err = float(jnp.max(jnp.abs(out_bf - ref)))
            assert jnp.allclose(out_bf, ref, atol=5e-2, rtol=5e-2), ("bf16", err)

    print("KERNEL_OK")
</pallas_src>

<mosaic_0001>
module attributes {stable_mosaic.version = 11 : i64} {
  func.func @_matmul_kernel(%arg0: i32, %arg1: i32, %arg2: i32, %arg3: memref<8x64xf32, #tpu.memory_space<vmem>>, %arg4: memref<64x128xf32, #tpu.memory_space<vmem>>, %arg5: memref<8x128xf32, #tpu.memory_space<vmem>>, %arg6: memref<8x128xf32, #tpu.memory_space<vmem>>) attributes {dimension_semantics = [#tpu.dimension_semantics<parallel>, #tpu.dimension_semantics<parallel>, #tpu.dimension_semantics<arbitrary>], iteration_bounds = array<i64: 2, 1, 1>, scalar_prefetch = 0 : i64, scratch_operands = 1 : i64, tpu.core_type = #tpu.core_type<tc>, window_params = [{transform_indices = @transform_0, window_bounds = array<i64: 8, 64>}, {transform_indices = @transform_1, window_bounds = array<i64: 64, 128>}, {transform_indices = @transform_2, window_bounds = array<i64: 8, 128>}]} {
    %c0_i32 = arith.constant 0 : i32
    %0 = arith.cmpi eq, %arg2, %c0_i32 : i32
    %1 = arith.extui %0 : i1 to i32
    %c0_i32_0 = arith.constant 0 : i32
    %2 = arith.cmpi ne, %1, %c0_i32_0 : i32
    scf.if %2 {
      %cst_10 = arith.constant 0.000000e+00 : f32
      %12 = vector.broadcast %cst_10 : f32 to vector<8x128xf32>
      %c0_11 = arith.constant 0 : index
      %c0_12 = arith.constant 0 : index
      %13 = vector.load %arg6[%c0_11, %c0_12] : memref<8x128xf32, #tpu.memory_space<vmem>>, vector<8x128xf32>
      tpu.vector_store %arg6[%c0_11, %c0_12], %12 {strides = array<i32>} : memref<8x128xf32, #tpu.memory_space<vmem>>, vector<8x128xf32>,
    } else {
    }
    %c0 = arith.constant 0 : index
    %c0_1 = arith.constant 0 : index
    %3 = vector.load %arg6[%c0, %c0_1] : memref<8x128xf32, #tpu.memory_space<vmem>>, vector<8x128xf32>
    %c0_2 = arith.constant 0 : index
    %c0_3 = arith.constant 0 : index
    %4 = vector.load %arg3[%c0_2, %c0_3] : memref<8x64xf32, #tpu.memory_space<vmem>>, vector<8x64xf32>
    %c0_4 = arith.constant 0 : index
    %c0_5 = arith.constant 0 : index
    %5 = vector.load %arg4[%c0_4, %c0_5] : memref<64x128xf32, #tpu.memory_space<vmem>>, vector<64x128xf32>
    %cst = arith.constant dense<0.000000e+00> : vector<8x128xf32>
    %6 = tpu.matmul %4, %5, %cst {dimension_numbers = #tpu.dot_dimension_numbers<[1], [0], [0], [1], [0, 0, 1, 1], [], []>} : vector<8x64xf32>, vector<64x128xf32>, vector<8x128xf32> -> vector<8x128xf32>
    %7 = arith.addf %3, %6 : vector<8x128xf32>
    %c0_6 = arith.constant 0 : index
    %c0_7 = arith.constant 0 : index
    %8 = vector.load %arg6[%c0_6, %c0_7] : memref<8x128xf32, #tpu.memory_space<vmem>>, vector<8x128xf32>
    tpu.vector_store %arg6[%c0_6, %c0_7], %7 {strides = array<i32>} : memref<8x128xf32, #tpu.memory_space<vmem>>, vector<8x128xf32>,
    %c0_i32_8 = arith.constant 0 : i32
    %9 = arith.cmpi eq, %arg2, %c0_i32_8 : i32
    %10 = arith.extui %9 : i1 to i32
    %c0_i32_9 = arith.constant 0 : i32
    %11 = arith.cmpi ne, %10, %c0_i32_9 : i32
    scf.if %11 {
      %c0_10 = arith.constant 0 : index
      %c0_11 = arith.constant 0 : index
      %12 = vector.load %arg6[%c0_10, %c0_11] : memref<8x128xf32, #tpu.memory_space<vmem>>, vector<8x128xf32>
      %c0_12 = arith.constant 0 : index
      %c0_13 = arith.constant 0 : index
      %13 = vector.load %arg5[%c0_12, %c0_13] : memref<8x128xf32, #tpu.memory_space<vmem>>, vector<8x128xf32>
      tpu.vector_store %arg5[%c0_12, %c0_13], %12 {strides = array<i32>} : memref<8x128xf32, #tpu.memory_space<vmem>>, vector<8x128xf32>,
    } else {
    }
    return
  }
  func.func @transform_0(%arg0: i32, %arg1: i32, %arg2: i32) -> (i32, i32) {
    %c0_i32 = arith.constant 0 : i32
    return %arg0, %arg2 : i32, i32
  }
  func.func @transform_1(%arg0: i32, %arg1: i32, %arg2: i32) -> (i32, i32) {
    %c0_i32 = arith.constant 0 : i32
    return %arg2, %arg1 : i32, i32
  }
  func.func @transform_2(%arg0: i32, %arg1: i32, %arg2: i32) -> (i32, i32) {
    %c0_i32 = arith.constant 0 : i32
    return %arg0, %arg1 : i32, i32
  }
}

</mosaic_0001>

<llo_original>
// kernel: tpu_custom_call.1
$region0: #{tpu_custom_call.1}
  #allocation0 [shape = 'u32[]', space=smem, size = 0x4, offset = 0x4, fixed_abs, tag = 'smem constant byte address 0x4 - core index']
  #allocation1 [shape = 'u32[144,128]{1,0:T(1,128)}', space=vmem, size = 0x12000, scoped, tag = 'internal scratch']
  #allocation2 [shape = 'f32[8,128]{1,0:T(8,128)}', space=vmem, size = 0x1000, scoped, tag = 'scratch operand']
  %s0 = inlined_call_operand.hbm [shape: f32[16,64], index: 0, kind: input, shape index: {}]
  %s1 = inlined_call_operand.hbm [shape: f32[64,128], index: 1, kind: input, shape index: {}]
  %s2 = inlined_call_operand.hbm [shape: f32[16,128], index: 2, kind: output, shape index: {}]
  %s3 = sld [smem:[#allocation0]]
  $region57: #{tpu_custom_call.1} parent=0
    _
  %s5 = ssub.s32 1, %s3
  %s6 = scalar_select 0, %s5, %s3
  $region1: #{tpu_custom_call.1} parent=0
    #allocation3 [shape = 'u8[8192]{0}', space=vmem, size = 0x2000, scoped, tag = 'input window, operand 0']
    #allocation4 [shape = 's32[2]{0}', space=sflag, size = 0x8, scoped, tag = 'scoped memory for tpu_custom_call.1']
    #allocation5 [shape = 's32[2]{0}', space=sflag, size = 0x8, scoped, tag = 'scoped memory for tpu_custom_call.1']
    #allocation6 [shape = 'u8[32768]{0}', space=vmem, size = 0x8000, scoped, tag = 'input window, operand 1, single buffered']
    #allocation7 [shape = 's32[1]{0}', space=sflag, size = 0x4, scoped, tag = 'scoped memory for tpu_custom_call.1']
    #allocation8 [shape = 'u8[8192]{0}', space=vmem, size = 0x2000, scoped, tag = 'output window, operand 0']
    %7 = vsyncpa [#allocation4], 0
    %s8 = scalar_lea.sflag [#allocation4], 1
    %9 = vsyncpa %s8, 0
    %10 = vsyncpa [#allocation7], 0
    %11 = vsyncpa [#allocation5], 0
    %s12 = scalar_lea.sflag [#allocation5], 1
    %13 = vsyncpa %s12, 0
    loop: start=0, step=1, limit=4
    $region2: #{tpu_custom_call.1} parent=1 // loop_pre_header
      _
    $region3: #{tpu_custom_call.1} parent=1 // loop_header
      %s15 = sphi 0, %s19
      %p16 = scmp.ge.s32.totalorder %s15, 4
      %s22 = sphi 0, %s41
      %s23 = sphi 0, %s37
      %s24 = sphi 0, %s33
      %s25 = sphi 0, %s22
      %s26 = sphi 0, %s23
      %s27 = sphi 0, %s24
      %s28 = sphi 0, %s25
      %s29 = sphi 0, %s26
      %s30 = sphi 0, %s27
      %s46 = sphi 0, %s48
      %s49 = sphi 0, %s46
      %s50 = sphi 0, %s49
      %s66 = sphi 0, %s50
      %s74 = sphi 0, %s76
      %s77 = sphi 0, %s74
      %s78 = sphi 0, %s77
      %s94 = sphi 0, %s78
      %s102 = sphi 0, %s104
      %s105 = sphi 0, %s102
      %s106 = sphi 0, %s105
      %s122 = sphi 0, %s106
    $region4: #{tpu_custom_call.1} parent=1 // loop_header_branch
      %18 = sbr.rel (%p16) target = $region8
    $region5: #{tpu_custom_call.1} parent=1 // loop_body
      %s20 = ssub.s32 %s15, 1
      %s21 = ssub.s32 %s15, 2
      %s31 = sadd.s32 1, %s24
      %p32 = scmp.ge.s32.totalorder %s31, 1
      %s33 = scalar_select %p32, 0, %s31
      %s34 = sadd.s32 1, %s23
      %s35 = scalar_select %p32, %s34, %s23
      %p36 = scmp.ge.s32.totalorder %s35, 1
      %s37 = scalar_select %p36, 0, %s35
      %s38 = sadd.s32 1, %s22
      %s39 = scalar_select %p36, %s38, %s22
      %p40 = scmp.ge.s32.totalorder %s39, 2
      %s41 = scalar_select %p40, 0, %s39
      %s42 = ssub.s32 %s22, %s41
      %s43 = ssub.s32 %s24, %s33
      %s44 = sor.u32 %s42, %s43
      %p45 = scmp.eq.s32.totalorder %s44, 0
      %s47 = sadd.s32 %s46, 1
      %s48 = scalar_select %p45, %s46, %s47
      %p51 = pneg %p45
      %p52 = scmp.eq.s32.totalorder %s15, 1
      %p53 = por %p51, %p52
      %p54 = scmp.ne.s32.totalorder %s46, %s49
      %p55 = scmp.eq.s32.totalorder %s15, 0
      %p56 = por %p54, %p55
      %p57 = scmp.ne.s32.totalorder %s46, %s49
      %p58 = scmp.eq.s32.totalorder %s20, 1
      %p59 = por %p57, %p58
      %p60 = scmp.ne.s32.totalorder %s49, %s50
      %p61 = scmp.eq.s32.totalorder %s20, 0
      %p62 = por %p60, %p61
      %p63 = scmp.ne.s32.totalorder %s49, %s50
      %p64 = scmp.eq.s32.totalorder %s21, 1
      %p65 = por %p63, %p64
      %p67 = scmp.ne.s32.totalorder %s50, %s66
      %p68 = scmp.eq.s32.totalorder %s21, 0
      %p69 = por %p67, %p68
      %s70 = ssub.s32 %s24, %s33
      %s71 = ssub.s32 %s23, %s37
      %s72 = sor.u32 %s70, %s71
      %p73 = scmp.eq.s32.totalorder %s72, 0
      %s75 = sadd.s32 %s74, 1
      %s76 = scalar_select %p73, %s74, %s75
      %p79 = pneg %p73
      %p80 = scmp.eq.s32.totalorder %s15, 1
      %p81 = por %p79, %p80
      %p82 = scmp.ne.s32.totalorder %s74, %s77
      %p83 = scmp.eq.s32.totalorder %s15, 0
      %p84 = por %p82, %p83
      %p85 = scmp.ne.s32.totalorder %s74, %s77
      %p86 = scmp.eq.s32.totalorder %s20, 1
      %p87 = por %p85, %p86
      %p88 = scmp.ne.s32.totalorder %s77, %s78
      %p89 = scmp.eq.s32.totalorder %s20, 0
      %p90 = por %p88, %p89
      %p91 = scmp.ne.s32.totalorder %s77, %s78
      %p92 = scmp.eq.s32.totalorder %s21, 1
      %p93 = por %p91, %p92
      %p95 = scmp.ne.s32.totalorder %s78, %s94
      %p96 = scmp.eq.s32.totalorder %s21, 0
      %p97 = por %p95, %p96
      %s98 = ssub.s32 %s22, %s41
      %s99 = ssub.s32 %s23, %s37
      %s100 = sor.u32 %s98, %s99
      %p101 = scmp.eq.s32.totalorder %s100, 0
      %s103 = sadd.s32 %s102, 1
      %s104 = scalar_select %p101, %s102, %s103
      %p107 = pneg %p101
      %p108 = scmp.eq.s32.totalorder %s15, 1
      %p109 = por %p107, %p108
      %p110 = scmp.ne.s32.totalorder %s102, %s105
      %p111 = scmp.eq.s32.totalorder %s15, 0
      %p112 = por %p110, %p111
      %p113 = scmp.ne.s32.totalorder %s102, %s105
      %p114 = scmp.eq.s32.totalorder %s20, 1
      %p115 = por %p113, %p114
      %p116 = scmp.ne.s32.totalorder %s105, %s106
      %p117 = scmp.eq.s32.totalorder %s20, 0
      %p118 = por %p116, %p117
      %p119 = scmp.ne.s32.totalorder %s105, %s106
      %p120 = scmp.eq.s32.totalorder %s21, 1
      %p121 = por %p119, %p120
      %p123 = scmp.ne.s32.totalorder %s106, %s122
      %p124 = scmp.eq.s32.totalorder %s21, 0
      %p125 = por %p123, %p124
      %p126 = scmp.le.s32.totalorder 1, %s15
      %p127 = scmp.lt.s32.totalorder %s15, 3
      %p128 = pnand %p126, %p127
      %p129 = pneg %p128
      // Predicated region
      $region9: #{tpu_custom_call.1} parent=5 // pred_check
        _
      $region10: #{tpu_custom_call.1} parent=5 // pred_check_branch
        %131 = sbr.rel (%p128) target = $region12
      $region11: #{tpu_custom_call.1} parent=5 // pred_region
        %s132 = ssub.s32 %s15, 1
        // Predicated region
        $region13: #{tpu_custom_call.1} parent=11 // pred_check
          %p133 = pneg %p90
        $region14: #{tpu_custom_call.1} parent=11 // pred_check_branch
          %135 = sbr.rel (%p133) target = $region16
        $region15: #{tpu_custom_call.1} parent=11 // pred_region
          %s136 = smul.u32 8, %s27
          %s138 = ssub.s32 1024, 1024
          %139 = vsyncadd [#allocation7], %s138
          %s140 = sadd.s32 %s26, %s136
          %s141 = smul.addr %s140, 128
          %s142 = scalar_lea.hbm %s1, %s141
          %s143 = sshll.u32 [#allocation6], 4
          %s144 = int_to_ptr.vmem [resolvable:$true] %s143
          %149 = dma.hbm_to_vmem [thread:$0]  %s142, 1024, %s144, [#allocation7], 128, 128, 8
        $region16: #{tpu_custom_call.1} parent=11 // pred_fallthru
          _
      $region12: #{tpu_custom_call.1} parent=5 // pred_fallthru
        _
      %p150 = scmp.lt.s32.totalorder %s15, 2
      // Predicated region
      $region17: #{tpu_custom_call.1} parent=5 // pred_check
        %p151 = pneg %p150
      $region18: #{tpu_custom_call.1} parent=5 // pred_check_branch
        %153 = sbr.rel (%p151) target = $region20
      $region19: #{tpu_custom_call.1} parent=5 // pred_region
        // Predicated region
        $region21: #{tpu_custom_call.1} parent=19 // pred_check
          %p154 = pneg %p56
        $region22: #{tpu_custom_call.1} parent=19 // pred_check_branch
          %156 = sbr.rel (%p154) target = $region24
        $region23: #{tpu_custom_call.1} parent=19 // pred_region
          %s157 = sand.u32 %s46, 1
          %s158 = scalar_lea.sflag [#allocation4], %s157
          %s159 = sand.u32 %s46, 1
          %s160 = smul.addr %s159, 8
          %s161 = scalar_lea.vmem [#allocation3], %s160
          %s163 = ssub.s32 128, 128
          %164 = vsyncadd %s158, %s163
          %s165 = sadd.s32 %s24, %s22
          %s166 = smul.addr %s165, 128
          %s167 = scalar_lea.hbm %s0, %s166
          %s169 = sshll.u32 %s161, 4
          %s170 = int_to_ptr.vmem [resolvable:$true] %s169
          %172 = dma.hbm_to_vmem [thread:$0]  %s167, 128, %s170, %s158
        $region24: #{tpu_custom_call.1} parent=19 // pred_fallthru
          _
      $region20: #{tpu_custom_call.1} parent=5 // pred_fallthru
        _
      %p173 = scmp.le.s32.totalorder 1, %s15
      %p174 = scmp.lt.s32.totalorder %s15, 3
      %p175 = pnand %p173, %p174
      %p176 = pneg %p175
      // Predicated region
      $region25: #{tpu_custom_call.1} parent=5 // pred_check
        _
      $region26: #{tpu_custom_call.1} parent=5 // pred_check_branch
        %178 = sbr.rel (%p175) target = $region28
      $region27: #{tpu_custom_call.1} parent=5 // pred_region
        %s179 = ssub.s32 %s15, 1
        %s180 = sand.u32 %s49, 1
        %s181 = scalar_lea.sflag [#allocation4], %s180
        %s182 = sand.u32 %s49, 1
        %s183 = smul.addr %s182, 8
        %s184 = scalar_lea.vmem [#allocation3], %s183
        // Predicated region
        $region29: #{tpu_custom_call.1} parent=27 // pred_check
          %p185 = pneg %p62
        $region30: #{tpu_custom_call.1} parent=27 // pred_check_branch
          %187 = sbr.rel (%p185) target = $region32
        $region31: #{tpu_custom_call.1} parent=27 // pred_region
          %188 = dma.done %s181, 128
        $region32: #{tpu_custom_call.1} parent=27 // pred_fallthru
          _
        // Predicated region
        $region33: #{tpu_custom_call.1} parent=27 // pred_check
          %p189 = pneg %p90
        $region34: #{tpu_custom_call.1} parent=27 // pred_check_branch
          %191 = sbr.rel (%p189) target = $region36
        $region35: #{tpu_custom_call.1} parent=27 // pred_region
          %192 = dma.done [#allocation7], 1024
        $region36: #{tpu_custom_call.1} parent=27 // pred_fallthru
          _
        %s193 = sand.u32 %s49, 1
        %s194 = scalar_lea.sflag [#allocation4], %s193
        %s195 = sand.u32 %s49, 1
        %s196 = smul.addr %s195, 8
        %s197 = scalar_lea.vmem [#allocation3], %s196
        %p198 = pneg %p62
        %p199 = pneg %p59
        %p200 = pneg %p90
        %p201 = pneg %p87
        %p202 = pneg %p118
        %p203 = pneg %p115
        %s204 = sand.u32 %s105, 1
        %s205 = scalar_lea.sflag [#allocation5], %s204
        %s206 = sand.u32 %s105, 1
        %s207 = smul.addr %s206, 8
        %s208 = scalar_lea.vmem [#allocation8], %s207
        %s209 = smul.u32 8, %s27
        %p210 = scmp.eq.s32.totalorder %s27, 0
        // Predicated region
        $region37: #{tpu_custom_call.1} parent=27 // pred_check
          %p211 = pneg %p210
        $region38: #{tpu_custom_call.1} parent=27 // pred_check_branch
          %213 = sbr.rel (%p211) target = $region40
        $region39: #{tpu_custom_call.1} parent=27 // pred_region
          %214 = vst [vmem:[#allocation2] sm:$0xff] 0.0
        $region40: #{tpu_custom_call.1} parent=27 // pred_fallthru
          _
        %v215 = vld [vmem:[#allocation2] sm:$0xff]
        %v216 = vld [vmem:[%s184] sm:$0xff]
        %v217 = vld [vmem:[#allocation6] sm:$0xff]
        %v218 = vld [vmem:[#allocation6 + $0x8] sm:$0xff]
        %v219 = vld [vmem:[#allocation6 + $0x10] sm:$0xff]
        %v220 = vld [vmem:[#allocation6 + $0x18] sm:$0xff]
        %v221 = vld [vmem:[#allocation6 + $0x20] sm:$0xff]
        %v222 = vld [vmem:[#allocation6 + $0x28] sm:$0xff]
        %v223 = vld [vmem:[#allocation6 + $0x30] sm:$0xff]
        %v224 = vld [vmem:[#allocation6 + $0x38] sm:$0xff]
        %vm225 = vcmask 523264
        %v227 = vsel %vm225, %v216, 0
        %229 = vmatprep.subr.mxu0 0.0
        %230 = vmatpush1.msra.mxu0 %v217
        %231 = vmatprep.subr.mxu0 0.0
        %232 = vmatpush1.msra.mxu0 %v218
        %233 = vmatprep.subr.mxu0 0.0
        %234 = vmatpush1.msra.mxu0 %v219
        %235 = vmatprep.subr.mxu0 0.0
        %236 = vmatpush1.msra.mxu0 %v220
        %237 = vmatprep.subr.mxu0 0.0
        %238 = vmatpush1.msra.mxu0 %v221
        %239 = vmatprep.subr.mxu0 0.0
        %240 = vmatpush1.msra.mxu0 %v222
        %241 = vmatprep.subr.mxu0 0.0
        %242 = vmatpush1.msra.mxu0 %v223
        %243 = vmatprep.subr.mxu0 0.0
        %244 = vmatpush1.msra.mxu0 %v224
        %245 = vmatprep.subr.mxu0 0.0
        %246 = vmatpush1.msra.mxu0 0.0
        %247 = vmatprep.subr.mxu0 0.0
        %248 = vmatpush1.msra.mxu0 0.0
        %249 = vmatprep.subr.mxu0 0.0
        %250 = vmatpush1.msra.mxu0 0.0
        %251 = vmatprep.subr.mxu0 0.0
        %252 = vmatpush1.msra.mxu0 0.0
        %253 = vmatprep.subr.mxu0 0.0
        %254 = vmatpush1.msra.mxu0 0.0
        %255 = vmatprep.subr.mxu0 0.0
        %256 = vmatpush1.msra.mxu0 0.0
        %257 = vmatprep.subr.mxu0 0.0
        %258 = vmatpush1.msra.mxu0 0.0
        %259 = vmatprep.subr.mxu0 0.0
        %260 = vmatpush1.msra.mxu0 0.0
        %261 = vmatprep.subr.mxu0 0.0
        %262 = vmatpush1.msra.mxu0 0.0
        %263 = vmatprep.subr.mxu0 0.0
        %264 = vmatpush1.msra.mxu0 0.0
        %265 = vmatprep.subr.mxu0 0.0
        %266 = vmatpush1.msra.mxu0 0.0
        %267 = vmatprep.subr.mxu0 0.0
        %268 = vmatpush1.msra.mxu0 0.0
        %269 = vmatprep.subr.mxu0 0.0
        %270 = vmatpush1.msra.mxu0 0.0
        %271 = vmatprep.subr.mxu0 0.0
        %272 = vmatpush1.msra.mxu0 0.0
        %273 = vmatprep.subr.mxu0 0.0
        %274 = vmatpush1.msra.mxu0 0.0
        %275 = vmatprep.subr.mxu0 0.0
        %276 = vmatpush1.msra.mxu0 0.0
        %277 = vmatprep.subr.mxu0 0.0
        %278 = vmatpush1.msra.mxu0 0.0
        %279 = vmatprep.subr.mxu0 0.0
        %280 = vmatpush1.msra.mxu0 0.0
        %281 = vmatprep.subr.mxu0 0.0
        %282 = vmatpush1.msra.mxu0 0.0
        %283 = vmatprep.subr.mxu0 0.0
        %284 = vmatpush1.msra.mxu0 0.0
        %285 = vmatprep.subr.mxu0 0.0
        %286 = vmatpush1.msra.mxu0 0.0
        %287 = vmatprep.subr.mxu0 0.0
        %288 = vmatpush1.msra.mxu0 0.0
        %289 = vmatprep.subr.mxu0 0.0
        %290 = vmatpush1.msra.mxu0 0.0
        %291 = vmatprep.subr.mxu0 0.0
        %292 = vmatpush1.msra.mxu0 0.0
        %293 = vmatprep.mubr.f32.mxu0 0.0
        %294 = vmatmul.mubr.f32.gmra.mrb[0].mxu0 %v227
        %v295 = vpop.f32.mrb[0].mxu0
        %v296 = vadd.f32 0.0, %v295
        %v297 = vpop.f32.mrb[0].mxu0
        %298 = vdwg.mxu0
        %v299 = vadd.f32 %v215, %v296
        %300 = vst [vmem:[#allocation2] sm:$0xff] %v299
        // Predicated region
        $region41: #{tpu_custom_call.1} parent=27 // pred_check
          %p301 = pneg %p210
        $region42: #{tpu_custom_call.1} parent=27 // pred_check_branch
          %303 = sbr.rel (%p301) target = $region44
        $region43: #{tpu_custom_call.1} parent=27 // pred_region
          %v304 = vld [vmem:[#allocation2] sm:$0xff]
          %305 = vst [vmem:[%s208] sm:$0xff] %v304
        $region44: #{tpu_custom_call.1} parent=27 // pred_fallthru
          _
        %s306 = sand.u32 %s105, 1
        %s307 = scalar_lea.sflag [#allocation5], %s306
        %s308 = sand.u32 %s105, 1
        %s309 = smul.addr %s308, 8
        %s310 = scalar_lea.vmem [#allocation8], %s309
        // Predicated region
        $region45: #{tpu_custom_call.1} parent=27 // pred_check
          %p311 = pneg %p115
        $region46: #{tpu_custom_call.1} parent=27 // pred_check_branch
          %313 = sbr.rel (%p311) target = $region48
        $region47: #{tpu_custom_call.1} parent=27 // pred_region
          %s315 = ssub.s32 128, 128
          %316 = vsyncadd %s307, %s315
          %s317 = sadd.s32 %s26, %s25
          %s318 = smul.addr %s317, 128
          %s319 = scalar_lea.hbm %s2, %s318
          %s321 = sshll.u32 %s310, 4
          %s322 = int_to_ptr.vmem [resolvable:$true] %s321
          %324 = dma.vmem_to_hbm [thread:$0]  %s322, 128, %s319, %s307
        $region48: #{tpu_custom_call.1} parent=27 // pred_fallthru
          _
      $region28: #{tpu_custom_call.1} parent=5 // pred_fallthru
        _
      %p325 = scmp.le.s32.totalorder 2, %s15
      // Predicated region
      $region49: #{tpu_custom_call.1} parent=5 // pred_check
        %p326 = pneg %p325
      $region50: #{tpu_custom_call.1} parent=5 // pred_check_branch
        %328 = sbr.rel (%p326) target = $region52
      $region51: #{tpu_custom_call.1} parent=5 // pred_region
        %s329 = ssub.s32 %s15, 2
        // Predicated region
        $region53: #{tpu_custom_call.1} parent=51 // pred_check
          %p330 = pneg %p121
        $region54: #{tpu_custom_call.1} parent=51 // pred_check_branch
          %332 = sbr.rel (%p330) target = $region56
        $region55: #{tpu_custom_call.1} parent=51 // pred_region
          %s333 = sand.u32 %s106, 1
          %s334 = scalar_lea.sflag [#allocation5], %s333
          %s335 = sand.u32 %s106, 1
          %s336 = smul.addr %s335, 8
          %s337 = scalar_lea.vmem [#allocation8], %s336
          %338 = dma.done %s334, 128
        $region56: #{tpu_custom_call.1} parent=51 // pred_fallthru
          _
      $region52: #{tpu_custom_call.1} parent=5 // pred_fallthru
        _
    $region6: #{tpu_custom_call.1} parent=1 // loop_footer
      %s19 = sadd.s32 1, %s15
    $region7: #{tpu_custom_call.1} parent=1 // loop_footer_branch
      %14 = sbr.rel target = $region3
    $region8: #{tpu_custom_call.1} parent=1 // loop_exit
      _
    %339 = vsyncpa [#allocation4], 1
    %s340 = scalar_lea.sflag [#allocation4], 1
    %341 = vsyncpa %s340, 1
    %342 = vsyncpa [#allocation7], 1
    %343 = vsyncpa [#allocation5], 1
    %s344 = scalar_lea.sflag [#allocation5], 1
    %345 = vsyncpa %s344, 1

</llo_original>
